<compile_context>
chip_gen: v6e
topology: v6e:2x2x1
jax: 0.10.0
libtpu: 0.0.40
codegen_flags: <defaults>
</compile_context>

<pallas_src>
import jax
import jax.numpy as jnp
from jax.experimental import pallas as pl
from jax.experimental.pallas import tpu as pltpu


def _upblock_kernel(x_ref, w_ref, b_ref, o_ref):
    # x_ref : (tp, C_in)          tp = th*W pixel rows         (pipelined)
    # w_ref : (2, C_in, 2*C_out)  resident in VMEM, indexed by ki
    # b_ref : (1, 2*C_out)        resident in VMEM
    # o_ref : (th, W, 2*C_out)    one ki-plane of the fused output (pipelined)
    ki = pl.program_id(2)
    acc = jnp.dot(x_ref[...], w_ref[ki], preferred_element_type=jnp.float32)
    acc = acc + b_ref[...]
    th, w, c2 = o_ref.shape
    o_ref[...] = acc.reshape(th, w, c2).astype(o_ref.dtype)


def _pick_h_tile(N, H, W, C_in, C_out, itemsize, budget_bytes):
    """Largest divisor of H whose tile fits the VMEM budget (>= ~8 grid steps)."""
    c2 = 2 * C_out
    # per h-row of a tile: x rows (2 bufs) + out rows (2 bufs) + f32 accumulator
    per_row = W * C_in * itemsize * 2 + W * c2 * itemsize * 2 + W * c2 * 4
    max_rows = max(1, budget_bytes // per_row)
    divs = [d for d in range(1, H + 1) if H % d == 0 and d <= max_rows]
    th = divs[-1]
    for d in reversed(divs):                    # largest tile with enough steps
        if N * (H // d) * 2 >= 8:
            th = d
            break
    return th


def upblock_forward(x_nchw, weight, bias):
    """ConvTranspose2d with kernel_size=(2,2), stride=(2,2).

    x_nchw : (N, C_in, H, W)
    weight : (C_in, C_out, 2, 2)   -- PyTorch ConvTranspose2d layout
    bias   : (C_out,)
    returns: (N, C_out, 2H, 2W)
    """
    N, C_in, H, W = x_nchw.shape
    assert weight.shape[0] == C_in
    C_out = weight.shape[1]
    assert (weight.shape[2], weight.shape[3]) == (2, 2)
    # TODO(synk): generalize the fused in-kernel reshape to W % 8 != 0.
    assert W % 8 == 0, "fused output layout assumes W is a multiple of 8"

    # ---- generation-aware VMEM budgeting ---------------------------------
    try:
        vmem_cap = int(pltpu.get_tpu_info().vmem_capacity_bytes)
    except Exception:
        vmem_cap = 64 * 1024 * 1024            # conservative v7x floor
    itemsize = jnp.dtype(x_nchw.dtype).itemsize
    c2 = 2 * C_out
    resident = 2 * C_in * c2 * itemsize + c2 * itemsize    # weight + bias (1 copy)
    budget = max(int(vmem_cap * 0.45) - resident, 1 << 20)
    th = _pick_h_tile(N, H, W, C_in, C_out, itemsize, budget)
    n_h = H // th
    tp = th * W                                 # pixel rows per grid step

    # ---- operand layouts ---------------------------------------------------
    # NCHW -> NHWC (input is the small tensor); output rearrange is fused.
    x_flat = jnp.transpose(x_nchw, (0, 2, 3, 1)).reshape(N * H * W, C_in)
    # weight[ci, co, ki, kj] -> w_k[ki, ci, kj*C_out + co]  (tap-major, channel-minor)
    w_k = jnp.transpose(weight, (2, 0, 3, 1)).reshape(2, C_in, c2)
    b_k = jnp.tile(bias, 2).reshape(1, c2)

    grid = (N, n_h, 2)                          # ki innermost: x block reused
    y6 = pl.pallas_call(
        _upblock_kernel,
        out_shape=jax.ShapeDtypeStruct((N, H, 2, W, c2), x_nchw.dtype),
        grid=grid,
        in_specs=[
            pl.BlockSpec((tp, C_in), lambda n, i, k: (n * n_h + i, 0)),
            pl.BlockSpec(memory_space=pltpu.MemorySpace.VMEM),   # weight resident
            pl.BlockSpec(memory_space=pltpu.MemorySpace.VMEM),   # bias   resident
        ],
        out_specs=pl.BlockSpec((None, th, None, W, c2),
                               lambda n, i, k: (n, i, k, 0, 0)),
        compiler_params=pltpu.CompilerParams(
            dimension_semantics=("parallel", "parallel", "arbitrary"),
            vmem_limit_bytes=int(vmem_cap * 0.7)),
    )(x_flat, w_k, b_k)

    # Free reshape: (N, H, 2, W, 2*C_out) is bit-identical to NHWC (N, 2H, 2W, C_out).
    y_nhwc = y6.reshape(N, 2 * H, 2 * W, C_out)
    # NHWC -> NCHW to match the PyTorch module interface.
    return jnp.transpose(y_nhwc, (0, 3, 1, 2))


if __name__ == "__main__":
    key = jax.random.PRNGKey(0)
    k_x, k_w, k_b = jax.random.split(key, 3)

    N, C_in, C_out, H, W = 2, 4, 4, 16, 16
    x = jax.random.normal(k_x, (N, C_in, H, W), dtype=jnp.float32)
    # ConvTranspose2d weight layout: (C_in, C_out, kH, kW)
    weight = jax.random.normal(k_w, (C_in, C_out, 2, 2), dtype=jnp.float32) * 0.1
    bias = jax.random.normal(k_b, (C_out,), dtype=jnp.float32) * 0.1

    fwd = jax.jit(upblock_forward)
    out = jax.block_until_ready(fwd(x, weight, bias))
    assert out.shape == (N, C_out, 2 * H, 2 * W)

    # reference: non-overlapping transposed conv == einsum tap scatter
    ref = jnp.einsum("nihw,iokl->nohkwl", x, weight).reshape(
        N, C_out, 2 * H, 2 * W) + bias[None, :, None, None]
    assert jnp.allclose(out, ref, atol=1e-5, rtol=1e-5)

    print("KERNEL_OK")
</pallas_src>

<mosaic_0001>
module attributes {stable_mosaic.version = 11 : i64} {
  func.func @_upblock_kernel(%arg0: i32, %arg1: i32, %arg2: i32, %arg3: memref<128x4xf32, #tpu.memory_space<vmem>>, %arg4: memref<2x4x8xf32, #tpu.memory_space<vmem>>, %arg5: memref<1x8xf32, #tpu.memory_space<vmem>>, %arg6: memref<1x8x1x16x8xf32, #tpu.memory_space<vmem>>) attributes {dimension_semantics = [#tpu.dimension_semantics<parallel>, #tpu.dimension_semantics<parallel>, #tpu.dimension_semantics<arbitrary>], iteration_bounds = array<i64: 2, 2, 2>, scalar_prefetch = 0 : i64, scratch_operands = 0 : i64, tpu.core_type = #tpu.core_type<tc>, window_params = [{transform_indices = @transform_0, window_bounds = array<i64: 128, 4>}, {pipeline_mode = #tpu.pipeline_mode<synchronous>, transform_indices = @transform_1, window_bounds = array<i64: 2, 4, 8>}, {pipeline_mode = #tpu.pipeline_mode<synchronous>, transform_indices = @transform_2, window_bounds = array<i64: 1, 8>}, {transform_indices = @transform_3, window_bounds = array<i64: 1, 8, 1, 16, 8>}]} {
    %c0 = arith.constant 0 : index
    %c0_0 = arith.constant 0 : index
    %0 = vector.load %arg3[%c0, %c0_0] : memref<128x4xf32, #tpu.memory_space<vmem>>, vector<128x4xf32>
    %1 = arith.index_cast %arg2 : i32 to index
    %c0_1 = arith.constant 0 : index
    %c0_2 = arith.constant 0 : index
    %2 = vector.load %arg4[%1, %c0_1, %c0_2] : memref<2x4x8xf32, #tpu.memory_space<vmem>>, vector<1x4x8xf32>
    %3 = vector.shape_cast %2 : vector<1x4x8xf32> to vector<4x8xf32>
    %cst = arith.constant dense<0.000000e+00> : vector<128x8xf32>
    %4 = tpu.matmul %0, %3, %cst {dimension_numbers = #tpu.dot_dimension_numbers<[1], [0], [0], [1], [0, 0, 1, 1], [], []>} : vector<128x4xf32>, vector<4x8xf32>, vector<128x8xf32> -> vector<128x8xf32>
    %c0_3 = arith.constant 0 : index
    %c0_4 = arith.constant 0 : index
    %5 = vector.load %arg5[%c0_3, %c0_4] : memref<1x8xf32, #tpu.memory_space<vmem>>, vector<1x8xf32>
    %6 = vector.broadcast %5 : vector<1x8xf32> to vector<128x8xf32>
    %7 = arith.addf %4, %6 : vector<128x8xf32>
    %8 = vector.shape_cast %7 : vector<128x8xf32> to vector<8x16x8xf32>
    %c0_5 = arith.constant 0 : index
    %c0_6 = arith.constant 0 : index
    %c0_7 = arith.constant 0 : index
    %c0_8 = arith.constant 0 : index
    %c0_9 = arith.constant 0 : index
    %9 = vector.load %arg6[%c0_5, %c0_6, %c0_7, %c0_8, %c0_9] : memref<1x8x1x16x8xf32, #tpu.memory_space<vmem>>, vector<1x8x1x16x8xf32>
    %10 = vector.shape_cast %9 : vector<1x8x1x16x8xf32> to vector<8x16x8xf32>
    %11 = vector.shape_cast %8 : vector<8x16x8xf32> to vector<1x8x1x16x8xf32>
    tpu.vector_store %arg6[%c0_5, %c0_6, %c0_7, %c0_8, %c0_9], %11 {strides = array<i32>} : memref<1x8x1x16x8xf32, #tpu.memory_space<vmem>>, vector<1x8x1x16x8xf32>,
    return
  }
  func.func @transform_0(%arg0: i32, %arg1: i32, %arg2: i32) -> (i32, i32) {
    %c2_i32 = arith.constant 2 : i32
    %0 = arith.muli %arg0, %c2_i32 : i32
    %1 = arith.addi %0, %arg1 : i32
    %c0_i32 = arith.constant 0 : i32
    %c0_i32_0 = arith.constant 0 : i32
    return %1, %c0_i32 : i32, i32
  }
  func.func @transform_1(%arg0: i32, %arg1: i32, %arg2: i32) -> (i32, i32, i32) {
    %c0_i32 = arith.constant 0 : i32
    %c0_i32_0 = arith.constant 0 : i32
    %c0_i32_1 = arith.constant 0 : i32
    %c0_i32_2 = arith.constant 0 : i32
    return %c0_i32, %c0_i32_0, %c0_i32_1 : i32, i32, i32
  }
  func.func @transform_2(%arg0: i32, %arg1: i32, %arg2: i32) -> (i32, i32) {
    %c0_i32 = arith.constant 0 : i32
    %c0_i32_0 = arith.constant 0 : i32
    %c0_i32_1 = arith.constant 0 : i32
    return %c0_i32, %c0_i32_0 : i32, i32
  }
  func.func @transform_3(%arg0: i32, %arg1: i32, %arg2: i32) -> (i32, i32, i32, i32, i32) {
    %c0_i32 = arith.constant 0 : i32
    %c0_i32_0 = arith.constant 0 : i32
    %c0_i32_1 = arith.constant 0 : i32
    return %arg0, %arg1, %arg2, %c0_i32, %c0_i32_0 : i32, i32, i32, i32, i32
  }
}

</mosaic_0001>

<llo_original>
// kernel: tile.9
$region0: #{tile.9}
  %s0 = inlined_call_operand.vmem [shape: f32[2,4], index: 0, kind: input, shape index: {}]
  %s1 = inlined_call_operand.vmem [shape: f32[1,8], index: 1, kind: output, shape index: {}]
  $region1: #{tile.9} parent=0
    #allocation0 [shape = 'u8[4096]{0}', space=vmem, size = 0x1000, scoped, tag = 'scoped mem for output reshape']
    #allocation1 [shape = 'u8[4096]{0}', space=vmem, size = 0x1000, scoped, tag = 'scoped mem for input reshape']
    %s3 = sshll.u32 1, 2
    %s4 = ssub.s32 %s3, 1
    %v5 = vld [vmem:[%s0] sm:%s4]
    %6 = vst [vmem:[#allocation1] sm:%s4] %v5
    %v7 = vld [vmem:[#allocation1] sm:$0x1]
    %vm8 = vcmask 31744
    %9 = vst.msk [vmem:[#allocation0] sm:$0x1] %vm8, %v7
    %s10 = scalar_lea.vmem [#allocation1], 1
    %v11 = vld [vmem:[%s10] sm:$0x1]
    %12 = vrot.lane.b32.xlu0 %v11, 4
    %v13 = vpop.permute.xlu0 %12
    %vm14 = vcmask 64544
    %15 = vst.msk [vmem:[#allocation0] sm:$0x1] %vm14, %v13
    %s17 = sshll.u32 1, 1
    %s18 = ssub.s32 %s17, 1
    %v20 = vld [vmem:[#allocation0] sm:%s18]
    %s21 = sshll.u32 1, 1
    %s22 = ssub.s32 %s21, 1
    %23 = vst [vmem:[%s1] sm:%s22] %v20

// kernel: tile.8
$region0: #{tile.8}
  #allocation0 [shape = 's32[1]{0}', space=sflag, size = 0x4, scoped, tag = 'scoped memory for tile.8']
  %s0 = inlined_call_operand.vmem [shape: f32[4], index: 0, kind: input, shape index: {}]
  %s1 = inlined_call_operand.vmem [shape: f32[2,4], index: 1, kind: output, shape index: {}]
  // Predicated region
  $region2: #{tile.8} parent=0 // pred_check
    _
  $region3: #{tile.8} parent=0 // pred_check_branch
    %3 = sbr.rel (0) target = $region5
  $region4: #{tile.8} parent=0 // pred_region
    _
  $region5: #{tile.8} parent=0 // pred_fallthru
    _
  %v4 = vld [vmem:[%s0] ss:$0 sm:$0xff]
  %5 = vst [vmem:[%s1] sm:$0x3] %v4

// kernel: upblock_forward.1
$region0: #{upblock_forward.1}
  #allocation0 [shape = 'u32[]', space=smem, size = 0x4, offset = 0x4, fixed_abs, tag = 'smem constant byte address 0x4 - core index']
  #allocation1 [shape = 'u32[144,128]{1,0:T(1,128)}', space=vmem, size = 0x12000, scoped, tag = 'internal scratch']
  %s0 = inlined_call_operand.vmem [shape: f32[512,4], index: 0, kind: input, shape index: {}]
  %s1 = inlined_call_operand.vmem [shape: f32[2,4,8], index: 1, kind: input, shape index: {}]
  %s2 = inlined_call_operand.vmem [shape: f32[1,8], index: 2, kind: input, shape index: {}]
  %s3 = inlined_call_operand.vmem [shape: f32[2,16,2,16,8], index: 3, kind: output, shape index: {}]
  %s4 = sld [smem:[#allocation0]]
  $region79: #{upblock_forward.1} parent=0
    _
  %s6 = ssub.s32 1, %s4
  %s7 = scalar_select 0, %s6, %s4
  $region1: #{upblock_forward.1} parent=0
    #allocation2 [shape = 'u8[131072]{0}', space=vmem, size = 0x20000, scoped, tag = 'output window, operand 0']
    loop: start=0, step=1, limit=10
    $region2: #{upblock_forward.1} parent=1 // loop_pre_header
      _
    $region3: #{upblock_forward.1} parent=1 // loop_header
      %s9 = sphi 0, %s13
      %p10 = scmp.ge.s32.totalorder %s9, 10
      %s16 = sphi 0, %s35
      %s17 = sphi 0, %s31
      %s18 = sphi 0, %s27
      %s19 = sphi 0, %s16
      %s20 = sphi 0, %s17
      %s21 = sphi 0, %s18
      %s22 = sphi 0, %s19
      %s23 = sphi 0, %s20
      %s24 = sphi 0, %s21
      %s42 = sphi 0, %s44
      %s45 = sphi 0, %s42
      %s46 = sphi 0, %s45
      %s62 = sphi 0, %s46
      %s66 = sphi 0, %s66
      %s68 = sphi 0, %s66
      %s69 = sphi 0, %s68
      %s83 = sphi 0, %s69
      %s87 = sphi 0, %s87
      %s89 = sphi 0, %s87
      %s90 = sphi 0, %s89
      %s104 = sphi 0, %s90
      %s114 = sphi 0, %s116
      %s117 = sphi 0, %s114
      %s118 = sphi 0, %s117
      %s134 = sphi 0, %s118
    $region4: #{upblock_forward.1} parent=1 // loop_header_branch
      %12 = sbr.rel (%p10) target = $region8
    $region5: #{upblock_forward.1} parent=1 // loop_body
      %s14 = ssub.s32 %s9, 1
      %s15 = ssub.s32 %s9, 2
      %s25 = sadd.s32 1, %s18
      %p26 = scmp.ge.s32.totalorder %s25, 2
      %s27 = scalar_select %p26, 0, %s25
      %s28 = sadd.s32 1, %s17
      %s29 = scalar_select %p26, %s28, %s17
      %p30 = scmp.ge.s32.totalorder %s29, 2
      %s31 = scalar_select %p30, 0, %s29
      %s32 = sadd.s32 1, %s16
      %s33 = scalar_select %p30, %s32, %s16
      %p34 = scmp.ge.s32.totalorder %s33, 2
      %s35 = scalar_select %p34, 0, %s33
      %s36 = smul.u32 %s16, 2
      %s37 = sadd.s32 %s36, %s17
      %s38 = smul.u32 %s35, 2
      %s39 = sadd.s32 %s38, %s31
      %s40 = ssub.s32 %s37, %s39
      %p41 = scmp.eq.s32.totalorder %s40, 0
      %s43 = sadd.s32 %s42, 1
      %s44 = scalar_select %p41, %s42, %s43
      %p47 = pneg %p41
      %p48 = scmp.eq.s32.totalorder %s9, 7
      %p49 = por %p47, %p48
      %p50 = scmp.ne.s32.totalorder %s42, %s45
      %p51 = scmp.eq.s32.totalorder %s9, 0
      %p52 = por %p50, %p51
      %p53 = scmp.ne.s32.totalorder %s42, %s45
      %p54 = scmp.eq.s32.totalorder %s14, 7
      %p55 = por %p53, %p54
      %p56 = scmp.ne.s32.totalorder %s45, %s46
      %p57 = scmp.eq.s32.totalorder %s14, 0
      %p58 = por %p56, %p57
      %p59 = scmp.ne.s32.totalorder %s45, %s46
      %p60 = scmp.eq.s32.totalorder %s15, 7
      %p61 = por %p59, %p60
      %p63 = scmp.ne.s32.totalorder %s46, %s62
      %p64 = scmp.eq.s32.totalorder %s15, 0
      %p65 = por %p63, %p64
      %s67 = sadd.s32 %s66, 1
      %p70 = scmp.eq.s32.totalorder %s9, 7
      %p71 = scmp.ne.s32.totalorder %s66, %s68
      %p72 = scmp.eq.s32.totalorder %s9, 0
      %p73 = por %p71, %p72
      %p74 = scmp.ne.s32.totalorder %s66, %s68
      %p75 = scmp.eq.s32.totalorder %s14, 7
      %p76 = por %p74, %p75
      %p77 = scmp.ne.s32.totalorder %s68, %s69
      %p78 = scmp.eq.s32.totalorder %s14, 0
      %p79 = por %p77, %p78
      %p80 = scmp.ne.s32.totalorder %s68, %s69
      %p81 = scmp.eq.s32.totalorder %s15, 7
      %p82 = por %p80, %p81
      %p84 = scmp.ne.s32.totalorder %s69, %s83
      %p85 = scmp.eq.s32.totalorder %s15, 0
      %p86 = por %p84, %p85
      %s88 = sadd.s32 %s87, 1
      %p91 = scmp.eq.s32.totalorder %s9, 7
      %p92 = scmp.ne.s32.totalorder %s87, %s89
      %p93 = scmp.eq.s32.totalorder %s9, 0
      %p94 = por %p92, %p93
      %p95 = scmp.ne.s32.totalorder %s87, %s89
      %p96 = scmp.eq.s32.totalorder %s14, 7
      %p97 = por %p95, %p96
      %p98 = scmp.ne.s32.totalorder %s89, %s90
      %p99 = scmp.eq.s32.totalorder %s14, 0
      %p100 = por %p98, %p99
      %p101 = scmp.ne.s32.totalorder %s89, %s90
      %p102 = scmp.eq.s32.totalorder %s15, 7
      %p103 = por %p101, %p102
      %p105 = scmp.ne.s32.totalorder %s90, %s104
      %p106 = scmp.eq.s32.totalorder %s15, 0
      %p107 = por %p105, %p106
      %s108 = ssub.s32 %s16, %s35
      %s109 = ssub.s32 %s17, %s31
      %s110 = sor.u32 %s108, %s109
      %s111 = ssub.s32 %s18, %s27
      %s112 = sor.u32 %s110, %s111
      %p113 = scmp.eq.s32.totalorder %s112, 0
      %s115 = sadd.s32 %s114, 1
      %s116 = scalar_select %p113, %s114, %s115
      %p119 = pneg %p113
      %p120 = scmp.eq.s32.totalorder %s9, 7
      %p121 = por %p119, %p120
      %p122 = scmp.ne.s32.totalorder %s114, %s117
      %p123 = scmp.eq.s32.totalorder %s9, 0
      %p124 = por %p122, %p123
      %p125 = scmp.ne.s32.totalorder %s114, %s117
      %p126 = scmp.eq.s32.totalorder %s14, 7
      %p127 = por %p125, %p126
      %p128 = scmp.ne.s32.totalorder %s117, %s118
      %p129 = scmp.eq.s32.totalorder %s14, 0
      %p130 = por %p128, %p129
      %p131 = scmp.ne.s32.totalorder %s117, %s118
      %p132 = scmp.eq.s32.totalorder %s15, 7
      %p133 = por %p131, %p132
      %p135 = scmp.ne.s32.totalorder %s118, %s134
      %p136 = scmp.eq.s32.totalorder %s15, 0
      %p137 = por %p135, %p136
      %p138 = scmp.le.s32.totalorder 1, %s9
      %p139 = scmp.lt.s32.totalorder %s9, 9
      %p140 = pnand %p138, %p139
      %p141 = pneg %p140
      // Predicated region
      $region9: #{upblock_forward.1} parent=5 // pred_check
        _
      $region10: #{upblock_forward.1} parent=5 // pred_check_branch
        %143 = sbr.rel (%p140) target = $region12
      $region11: #{upblock_forward.1} parent=5 // pred_region
        %s144 = ssub.s32 %s9, 1
        // Predicated region
        $region13: #{upblock_forward.1} parent=11 // pred_check
          %p145 = pneg %p79
        $region14: #{upblock_forward.1} parent=11 // pred_check_branch
          %147 = sbr.rel (%p145) target = $region16
        $region15: #{upblock_forward.1} parent=11 // pred_region
          _
        $region16: #{upblock_forward.1} parent=11 // pred_fallthru
          _
        // Predicated region
        $region17: #{upblock_forward.1} parent=11 // pred_check
          %p148 = pneg %p100
        $region18: #{upblock_forward.1} parent=11 // pred_check_branch
          %150 = sbr.rel (%p148) target = $region20
        $region19: #{upblock_forward.1} parent=11 // pred_region
          _
        $region20: #{upblock_forward.1} parent=11 // pred_fallthru
          _
      $region12: #{upblock_forward.1} parent=5 // pred_fallthru
        _
      %p151 = scmp.lt.s32.totalorder %s9, 8
      // Predicated region
      $region21: #{upblock_forward.1} parent=5 // pred_check
        %p152 = pneg %p151
      $region22: #{upblock_forward.1} parent=5 // pred_check_branch
        %154 = sbr.rel (%p152) target = $region24
      $region23: #{upblock_forward.1} parent=5 // pred_region
        // Predicated region
        $region25: #{upblock_forward.1} parent=23 // pred_check
          %p155 = pneg %p52
        $region26: #{upblock_forward.1} parent=23 // pred_check_branch
          %157 = sbr.rel (%p155) target = $region28
        $region27: #{upblock_forward.1} parent=23 // pred_region
          %s158 = smul.u32 %s16, 2
          %s159 = sadd.s32 %s158, %s17
          %s160 = smul.u32 16, %s159
          %p161 = scmp.lt.s32.totalorder %s160, 63
          %s162 = scalar_select %p161, %s160, 63
          %s163 = smul.addr %s162, 8
          %s164 = scalar_lea.vmem %s0, %s163
          %s165 = smul.u32 %s16, 2
          %s166 = sadd.s32 %s165, %s17
          %s167 = smul.u32 16, %s166
        $region28: #{upblock_forward.1} parent=23 // pred_fallthru
          _
      $region24: #{upblock_forward.1} parent=5 // pred_fallthru
        _
      %p168 = scmp.le.s32.totalorder 1, %s9
      %p169 = scmp.lt.s32.totalorder %s9, 9
      %p170 = pnand %p168, %p169
      %p171 = pneg %p170
      // Predicated region
      $region29: #{upblock_forward.1} parent=5 // pred_check
        _
      $region30: #{upblock_forward.1} parent=5 // pred_check_branch
        %173 = sbr.rel (%p170) target = $region32
      $region31: #{upblock_forward.1} parent=5 // pred_region
        %s174 = ssub.s32 %s9, 1
        %s175 = smul.u32 %s19, 2
        %s176 = sadd.s32 %s175, %s20
        %s177 = smul.u32 16, %s176
        %p178 = scmp.lt.s32.totalorder %s177, 63
        %s179 = scalar_select %p178, %s177, 63
        %s180 = smul.addr %s179, 8
        %s181 = scalar_lea.vmem %s0, %s180
        %p182 = pneg %p58
        %p183 = pneg %p55
        %p184 = pneg %p79
        %p185 = pneg %p76
        %p186 = pneg %p100
        %p187 = pneg %p97
        %p188 = pneg %p130
        %p189 = pneg %p127
        %s190 = sand.u32 %s117, 1
        %s191 = sand.u32 %s117, 1
        %s192 = smul.addr %s191, 128
        %s193 = scalar_lea.vmem [#allocation2], %s192
        %s194 = smul.u32 %s19, 2
        %s195 = sadd.s32 %s194, %s20
        %s196 = smul.u32 16, %s195
        %p197 = scmp.lt.s32.totalorder %s196, 63
        %s198 = scalar_select %p197, %s196, 63
        %s199 = smul.addr %s198, 8
        %s200 = scalar_lea.vmem %s0, %s199
        %s201 = smul.u32 %s19, 2
        %s202 = sadd.s32 %s201, %s20
        %s203 = smul.u32 16, %s202
        %s204 = smul.u32 8, %s20
        %v205 = vld [vmem:[%s200] sm:$0xff]
        %v206 = vld [vmem:[%s200 + $0x8] sm:$0xff]
        %v207 = vld [vmem:[%s200 + $0x10] sm:$0xff]
        %v208 = vld [vmem:[%s200 + $0x18] sm:$0xff]
        %v209 = vld [vmem:[%s200 + $0x20] sm:$0xff]
        %v210 = vld [vmem:[%s200 + $0x28] sm:$0xff]
        %v211 = vld [vmem:[%s200 + $0x30] sm:$0xff]
        %v212 = vld [vmem:[%s200 + $0x38] sm:$0xff]
        %v213 = vld [vmem:[%s200 + $0x40] sm:$0xff]
        %v214 = vld [vmem:[%s200 + $0x48] sm:$0xff]
        %v215 = vld [vmem:[%s200 + $0x50] sm:$0xff]
        %v216 = vld [vmem:[%s200 + $0x58] sm:$0xff]
        %v217 = vld [vmem:[%s200 + $0x60] sm:$0xff]
        %v218 = vld [vmem:[%s200 + $0x68] sm:$0xff]
        %v219 = vld [vmem:[%s200 + $0x70] sm:$0xff]
        %v220 = vld [vmem:[%s200 + $0x78] sm:$0xff]
        %s221 = smul.u32 %s21, 4
        %s222 = scalar_lea.vmem %s1, %s221
        %v223 = vld [vmem:[%s222] sm:$0xf]
        %v224 = vld [vmem:[%s2] sm:$0x1]
        %v226 = vlaneseq
        %v227 = vshrl.u32 %v226, 7
        %v228 = vsub.s32 0, %v227
        %v229 = vrot.slane %v224, %v228
        %vm231 = vcmask 31744
        %v233 = vsel %vm231, %v205, 0
        %v236 = vsel %vm231, %v206, 0
        %v239 = vsel %vm231, %v207, 0
        %v242 = vsel %vm231, %v208, 0
        %v245 = vsel %vm231, %v209, 0
        %v248 = vsel %vm231, %v210, 0
        %v251 = vsel %vm231, %v211, 0
        %v254 = vsel %vm231, %v212, 0
        %v257 = vsel %vm231, %v213, 0
        %v260 = vsel %vm231, %v214, 0
        %v263 = vsel %vm231, %v215, 0
        %v266 = vsel %vm231, %v216, 0
        %v269 = vsel %vm231, %v217, 0
        %v272 = vsel %vm231, %v218, 0
        %v275 = vsel %vm231, %v219, 0
        %v278 = vsel %vm231, %v220, 0
        %vm280 = vcmask 1043456
        %v282 = vsel %vm280, %v223, 0
        %284 = vmatprep.subr.mxu0 0.0
        %285 = vmatpush1.msra.mxu0 0.0
        %286 = vmatprep.subr.mxu0 0.0
        %287 = vmatpush1.msra.mxu0 0.0
        %288 = vmatprep.subr.mxu0 0.0
        %289 = vmatpush1.msra.mxu0 0.0
        %290 = vmatprep.subr.mxu0 0.0
        %291 = vmatpush1.msra.mxu0 0.0
        %292 = vmatprep.subr.mxu0 0.0
        %293 = vmatpush1.msra.mxu0 0.0
        %294 = vmatprep.subr.mxu0 0.0
        %295 = vmatpush1.msra.mxu0 0.0
        %296 = vmatprep.subr.mxu0 0.0
        %297 = vmatpush1.msra.mxu0 0.0
        %298 = vmatprep.subr.mxu0 0.0
        %299 = vmatpush1.msra.mxu0 0.0
        %300 = vmatprep.subr.mxu0 0.0
        %301 = vmatpush1.msra.mxu0 0.0
        %302 = vmatprep.subr.mxu0 0.0
        %303 = vmatpush1.msra.mxu0 0.0
        %304 = vmatprep.subr.mxu0 0.0
        %305 = vmatpush1.msra.mxu0 0.0
        %306 = vmatprep.subr.mxu0 0.0
        %307 = vmatpush1.msra.mxu0 0.0
        %308 = vmatprep.subr.mxu0 0.0
        %309 = vmatpush1.msra.mxu0 0.0
        %310 = vmatprep.subr.mxu0 0.0
        %311 = vmatpush1.msra.mxu0 0.0
        %312 = vmatprep.subr.mxu0 0.0
        %313 = vmatpush1.msra.mxu0 0.0
        %314 = vmatprep.subr.mxu0 0.0
        %315 = vmatpush1.msra.mxu0 %v282
        %316 = vmatprep.subr.mxu0 0.0
        %317 = vmatpush2.msra.mxu0 0.0
        %318 = vmatprep.subr.mxu0 0.0
        %319 = vmatpush2.msra.mxu0 0.0
        %320 = vmatprep.subr.mxu0 0.0
        %321 = vmatpush2.msra.mxu0 0.0
        %322 = vmatprep.subr.mxu0 0.0
        %323 = vmatpush2.msra.mxu0 0.0
        %324 = vmatprep.subr.mxu0 0.0
        %325 = vmatpush2.msra.mxu0 0.0
        %326 = vmatprep.subr.mxu0 0.0
        %327 = vmatpush2.msra.mxu0 0.0
        %328 = vmatprep.subr.mxu0 0.0
        %329 = vmatpush2.msra.mxu0 0.0
        %330 = vmatprep.subr.mxu0 0.0
        %331 = vmatpush2.msra.mxu0 0.0
        %332 = vmatprep.subr.mxu0 0.0
        %333 = vmatpush2.msra.mxu0 0.0
        %334 = vmatprep.subr.mxu0 0.0
        %335 = vmatpush2.msra.mxu0 0.0
        %336 = vmatprep.subr.mxu0 0.0
        %337 = vmatpush2.msra.mxu0 0.0
        %338 = vmatprep.subr.mxu0 0.0
        %339 = vmatpush2.msra.mxu0 0.0
        %340 = vmatprep.subr.mxu0 0.0
        %341 = vmatpush2.msra.mxu0 0.0
        %342 = vmatprep.subr.mxu0 0.0
        %343 = vmatpush2.msra.mxu0 0.0
        %344 = vmatprep.subr.mxu0 0.0
        %345 = vmatpush2.msra.mxu0 0.0
        %346 = vmatprep.subr.mxu0 0.0
        %347 = vmatpush2.msra.mxu0 0.0
        %348 = vmatprep.mubr.f32.mxu0 0.0
        %349 = vmatmul.mubr.f32.gmra.mxu0 %v233
        %v350 = vpop.f32.mrf.mxu0
        %v351 = vadd.f32 %v229, %v350
        %v352 = vpop.f32.mrf.mxu0
        %353 = vmatprep.mubr.f32.mxu0 0.0
        %354 = vmatmul.mubr.f32.gmra.mxu0 %v236
        %v355 = vpop.f32.mrf.mxu0
        %v356 = vadd.f32 %v229, %v355
        %v357 = vpop.f32.mrf.mxu0
        %358 = vmatprep.mubr.f32.mxu0 0.0
        %359 = vmatmul.mubr.f32.gmra.mxu0 %v239
        %v360 = vpop.f32.mrf.mxu0
        %v361 = vadd.f32 %v229, %v360
        %v362 = vpop.f32.mrf.mxu0
        %363 = vmatprep.mubr.f32.mxu0 0.0
        %364 = vmatmul.mubr.f32.gmra.mxu0 %v242
        %v365 = vpop.f32.mrf.mxu0
        %v366 = vadd.f32 %v229, %v365
        %v367 = vpop.f32.mrf.mxu0
        %368 = vmatprep.mubr.f32.mxu0 0.0
        %369 = vmatmul.mubr.f32.gmra.mxu0 %v245
        %v370 = vpop.f32.mrf.mxu0
        %v371 = vadd.f32 %v229, %v370
        %v372 = vpop.f32.mrf.mxu0
        %373 = vmatprep.mubr.f32.mxu0 0.0
        %374 = vmatmul.mubr.f32.gmra.mxu0 %v248
        %v375 = vpop.f32.mrf.mxu0
        %v376 = vadd.f32 %v229, %v375
        %v377 = vpop.f32.mrf.mxu0
        %378 = vmatprep.mubr.f32.mxu0 0.0
        %379 = vmatmul.mubr.f32.gmra.mxu0 %v251
        %v380 = vpop.f32.mrf.mxu0
        %v381 = vadd.f32 %v229, %v380
        %v382 = vpop.f32.mrf.mxu0
        %383 = vmatprep.mubr.f32.mxu0 0.0
        %384 = vmatmul.mubr.f32.gmra.mxu0 %v254
        %v385 = vpop.f32.mrf.mxu0
        %v386 = vadd.f32 %v229, %v385
        %v387 = vpop.f32.mrf.mxu0
        %388 = vmatprep.mubr.f32.mxu0 0.0
        %389 = vmatmul.mubr.f32.gmra.mxu0 %v257
        %v390 = vpop.f32.mrf.mxu0
        %v391 = vadd.f32 %v229, %v390
        %v392 = vpop.f32.mrf.mxu0
        %393 = vmatprep.mubr.f32.mxu0 0.0
        %394 = vmatmul.mubr.f32.gmra.mxu0 %v260
        %v395 = vpop.f32.mrf.mxu0
        %v396 = vadd.f32 %v229, %v395
        %v397 = vpop.f32.mrf.mxu0
        %398 = vmatprep.mubr.f32.mxu0 0.0
        %399 = vmatmul.mubr.f32.gmra.mxu0 %v263
        %v400 = vpop.f32.mrf.mxu0
        %v401 = vadd.f32 %v229, %v400
        %v402 = vpop.f32.mrf.mxu0
        %403 = vmatprep.mubr.f32.mxu0 0.0
        %404 = vmatmul.mubr.f32.gmra.mxu0 %v266
        %v405 = vpop.f32.mrf.mxu0
        %v406 = vadd.f32 %v229, %v405
        %v407 = vpop.f32.mrf.mxu0
        %408 = vmatprep.mubr.f32.mxu0 0.0
        %409 = vmatmul.mubr.f32.gmra.mxu0 %v269
        %v410 = vpop.f32.mrf.mxu0
        %v411 = vadd.f32 %v229, %v410
        %v412 = vpop.f32.mrf.mxu0
        %413 = vmatprep.mubr.f32.mxu0 0.0
        %414 = vmatmul.mubr.f32.gmra.mxu0 %v272
        %v415 = vpop.f32.mrf.mxu0
        %v416 = vadd.f32 %v229, %v415
        %v417 = vpop.f32.mrf.mxu0
        %418 = vmatprep.mubr.f32.mxu0 0.0
        %419 = vmatmul.mubr.f32.gmra.mxu0 %v275
        %v420 = vpop.f32.mrf.mxu0
        %v421 = vadd.f32 %v229, %v420
        %v422 = vpop.f32.mrf.mxu0
        %423 = vmatprep.mubr.f32.mxu0 0.0
        %424 = vmatmul.mubr.f32.gmra.mxu0 %v278
        %v425 = vpop.f32.mrf.mxu0
        %v426 = vadd.f32 %v229, %v425
        %v427 = vpop.f32.mrf.mxu0
        %428 = vdwg.mxu0
        %vm429 = vcmask 64512
        %430 = vst.msk [vmem:[%s193] sm:$0xff] %vm429, %v351
        %431 = vst.msk [vmem:[%s193 + $0x8] sm:$0xff] %vm429, %v356
        %432 = vst.msk [vmem:[%s193 + $0x10] sm:$0xff] %vm429, %v361
        %433 = vst.msk [vmem:[%s193 + $0x18] sm:$0xff] %vm429, %v366
        %434 = vst.msk [vmem:[%s193 + $0x20] sm:$0xff] %vm429, %v371
        %435 = vst.msk [vmem:[%s193 + $0x28] sm:$0xff] %vm429, %v376
        %436 = vst.msk [vmem:[%s193 + $0x30] sm:$0xff] %vm429, %v381
        %437 = vst.msk [vmem:[%s193 + $0x38] sm:$0xff] %vm429, %v386
        %438 = vst.msk [vmem:[%s193 + $0x40] sm:$0xff] %vm429, %v391
        %439 = vst.msk [vmem:[%s193 + $0x48] sm:$0xff] %vm429, %v396
        %440 = vst.msk [vmem:[%s193 + $0x50] sm:$0xff] %vm429, %v401
        %441 = vst.msk [vmem:[%s193 + $0x58] sm:$0xff] %vm429, %v406
        %442 = vst.msk [vmem:[%s193 + $0x60] sm:$0xff] %vm429, %v411
        %443 = vst.msk [vmem:[%s193 + $0x68] sm:$0xff] %vm429, %v416
        %444 = vst.msk [vmem:[%s193 + $0x70] sm:$0xff] %vm429, %v421
        %445 = vst.msk [vmem:[%s193 + $0x78] sm:$0xff] %vm429, %v426
        %s446 = sand.u32 %s117, 1
        %s447 = sand.u32 %s117, 1
        %s448 = smul.addr %s447, 128
        %s449 = scalar_lea.vmem [#allocation2], %s448
        // Predicated region
        $region33: #{upblock_forward.1} parent=31 // pred_check
          %p450 = pneg %p127
        $region34: #{upblock_forward.1} parent=31 // pred_check_branch
          %452 = sbr.rel (%p450) target = $region36
        $region35: #{upblock_forward.1} parent=31 // pred_region
          %s453 = smul.u32 8, %s20
          %s454 = smul.addr %s21, 2
          %s455 = smul.addr %s453, 4
          %s456 = sadd.s32 %s454, %s455
          %s457 = smul.addr %s19, 64
          %s458 = sadd.s32 %s456, %s457
          %s459 = smul.addr %s458, 8
          %s460 = scalar_lea.vmem %s3, %s459
          // Predicated region
          $region37: #{upblock_forward.1} parent=35 // pred_check
            _
          $region38: #{upblock_forward.1} parent=35 // pred_check_branch
            %462 = sbr.rel (0) target = $region40
          $region39: #{upblock_forward.1} parent=35 // pred_region
            // Predicated region
            $region41: #{upblock_forward.1} parent=39 // pred_check
              _
            $region42: #{upblock_forward.1} parent=39 // pred_check_branch
              %464 = sbr.rel (0) target = $region44
            $region43: #{upblock_forward.1} parent=39 // pred_region
              // Predicated region
              $region56: #{upblock_forward.1} parent=43 // pred_check
                _
              $region57: #{upblock_forward.1} parent=43 // pred_check_branch
                %510 = sbr.rel (0) target = $region59
              $region58: #{upblock_forward.1} parent=43 // pred_region
                loop: start=0, step=1, limit=1
                $region60: #{upblock_forward.1} parent=58 // loop_pre_header
                  _
                $region61: #{upblock_forward.1} parent=58 // loop_header
                  %s512 = sphi 0, %s516
                  %p513 = scmp.ge.s32.totalorder %s512, 1
                  %s517 = sphi %s449, %s449
                  %s518 = sphi %s460, %s460
                $region62: #{upblock_forward.1} parent=58 // loop_header_branch
                  %515 = sbr.rel (%p513) target = $region66
                $region63: #{upblock_forward.1} parent=58 // loop_body
                  %v519 = vld [vmem:[%s517] sm:$0xff]
                  %520 = vst [vmem:[%s518] sm:$0xff] %v519
                  %v521 = vld [vmem:[%s517 + $0x8] sm:$0xff]
                  %522 = vst [vmem:[%s518 + $0x8] sm:$0xff] %v521
                  %v523 = vld [vmem:[%s517 + $0x10] sm:$0xff]
                  %524 = vst [vmem:[%s518 + $0x20] sm:$0xff] %v523
                  %v525 = vld [vmem:[%s517 + $0x18] sm:$0xff]
                  %526 = vst [vmem:[%s518 + $0x28] sm:$0xff] %v525
                  %v527 = vld [vmem:[%s517 + $0x20] sm:$0xff]
                  %528 = vst [vmem:[%s518 + $0x40] sm:$0xff] %v527
                  %v529 = vld [vmem:[%s517 + $0x28] sm:$0xff]
                  %530 = vst [vmem:[%s518 + $0x48] sm:$0xff] %v529
                  %v531 = vld [vmem:[%s517 + $0x30] sm:$0xff]
                  %532 = vst [vmem:[%s518 + $0x60] sm:$0xff] %v531
                  %v533 = vld [vmem:[%s517 + $0x38] sm:$0xff]
                  %534 = vst [vmem:[%s518 + $0x68] sm:$0xff] %v533
                  %v535 = vld [vmem:[%s517 + $0x40] sm:$0xff]
                  %536 = vst [vmem:[%s518 + $0x80] sm:$0xff] %v535
                  %v537 = vld [vmem:[%s517 + $0x48] sm:$0xff]
                  %538 = vst [vmem:[%s518 + $0x88] sm:$0xff] %v537
                  %v539 = vld [vmem:[%s517 + $0x50] sm:$0xff]
                  %540 = vst [vmem:[%s518 + $0xa0] sm:$0xff] %v539
                  %v541 = vld [vmem:[%s517 + $0x58] sm:$0xff]
                  %542 = vst [vmem:[%s518 + $0xa8] sm:$0xff] %v541
                  %v543 = vld [vmem:[%s517 + $0x60] sm:$0xff]
                  %544 = vst [vmem:[%s518 + $0xc0] sm:$0xff] %v543
                  %v545 = vld [vmem:[%s517 + $0x68] sm:$0xff]
                  %546 = vst [vmem:[%s518 + $0xc8] sm:$0xff] %v545
                  %v547 = vld [vmem:[%s517 + $0x70] sm:$0xff]
                  %548 = vst [vmem:[%s518 + $0xe0] sm:$0xff] %v547
                  %v549 = vld [vmem:[%s517 + $0x78] sm:$0xff]
                  %550 = vst [vmem:[%s518 + $0xe8] sm:$0xff] %v549
                $region64: #{upblock_forward.1} parent=58 // loop_footer
                  %s516 = sadd.s32 1, %s512
                $region65: #{upblock_forward.1} parent=58 // loop_footer_branch
                  %511 = sbr.rel target = $region61
                $region66: #{upblock_forward.1} parent=58 // loop_exit
                  _
              $region59: #{upblock_forward.1} parent=43 // pred_fallthru
                _
              // Predicated region
              $region67: #{upblock_forward.1} parent=43 // pred_check
                _
              $region68: #{upblock_forward.1} parent=43 // pred_check_branch
                %552 = sbr.rel target = $region70
              $region69: #{upblock_forward.1} parent=43 // pred_region
                _
              $region70: #{upblock_forward.1} parent=43 // pred_fallthru
                _
            $region44: #{upblock_forward.1} parent=39 // pred_fallthru
              _
            // Predicated region
            $region45: #{upblock_forward.1} parent=39 // pred_check
              _
            $region46: #{upblock_forward.1} parent=39 // pred_check_branch
              %466 = sbr.rel target = $region48
            $region47: #{upblock_forward.1} parent=39 // pred_region
              %s468 = ssub.s32 256, 1
              loop: start=0, step=1, limit=1
              $region49: #{upblock_forward.1} parent=47 // loop_pre_header
                _
              $region50: #{upblock_forward.1} parent=47 // loop_header
                %s470 = sphi 0, %s474
                %p471 = scmp.ge.s32.totalorder %s470, 1
                %s475 = sphi %s449, %s449
                %s476 = sphi %s460, %s460
              $region51: #{upblock_forward.1} parent=47 // loop_header_branch
                %473 = sbr.rel (%p471) target = $region55
              $region52: #{upblock_forward.1} parent=47 // loop_body
                %v477 = vld [vmem:[%s475] sm:%s468]
                %478 = vst [vmem:[%s476] sm:%s468] %v477
                %v479 = vld [vmem:[%s475 + $0x8] sm:%s468]
                %480 = vst [vmem:[%s476 + $0x8] sm:%s468] %v479
                %v481 = vld [vmem:[%s475 + $0x10] sm:%s468]
                %482 = vst [vmem:[%s476 + $0x20] sm:%s468] %v481
                %v483 = vld [vmem:[%s475 + $0x18] sm:%s468]
                %484 = vst [vmem:[%s476 + $0x28] sm:%s468] %v483
                %v485 = vld [vmem:[%s475 + $0x20] sm:%s468]
                %486 = vst [vmem:[%s476 + $0x40] sm:%s468] %v485
                %v487 = vld [vmem:[%s475 + $0x28] sm:%s468]
                %488 = vst [vmem:[%s476 + $0x48] sm:%s468] %v487
                %v489 = vld [vmem:[%s475 + $0x30] sm:%s468]
                %490 = vst [vmem:[%s476 + $0x60] sm:%s468] %v489
                %v491 = vld [vmem:[%s475 + $0x38] sm:%s468]
                %492 = vst [vmem:[%s476 + $0x68] sm:%s468] %v491
                %v493 = vld [vmem:[%s475 + $0x40] sm:%s468]
                %494 = vst [vmem:[%s476 + $0x80] sm:%s468] %v493
                %v495 = vld [vmem:[%s475 + $0x48] sm:%s468]
                %496 = vst [vmem:[%s476 + $0x88] sm:%s468] %v495
                %v497 = vld [vmem:[%s475 + $0x50] sm:%s468]
                %498 = vst [vmem:[%s476 + $0xa0] sm:%s468] %v497
                %v499 = vld [vmem:[%s475 + $0x58] sm:%s468]
                %500 = vst [vmem:[%s476 + $0xa8] sm:%s468] %v499
                %v501 = vld [vmem:[%s475 + $0x60] sm:%s468]
                %502 = vst [vmem:[%s476 + $0xc0] sm:%s468] %v501
                %v503 = vld [vmem:[%s475 + $0x68] sm:%s468]
                %504 = vst [vmem:[%s476 + $0xc8] sm:%s468] %v503
                %v505 = vld [vmem:[%s475 + $0x70] sm:%s468]
                %506 = vst [vmem:[%s476 + $0xe0] sm:%s468] %v505
                %v507 = vld [vmem:[%s475 + $0x78] sm:%s468]
                %508 = vst [vmem:[%s476 + $0xe8] sm:%s468] %v507
              $region53: #{upblock_forward.1} parent=47 // loop_footer
                %s474 = sadd.s32 1, %s470
              $region54: #{upblock_forward.1} parent=47 // loop_footer_branch
                %469 = sbr.rel target = $region50
              $region55: #{upblock_forward.1} parent=47 // loop_exit
                _
            $region48: #{upblock_forward.1} parent=39 // pred_fallthru
              _
          $region40: #{upblock_forward.1} parent=35 // pred_fallthru
            _
          %553 = vnop
        $region36: #{upblock_forward.1} parent=31 // pred_fallthru
          _
      $region32: #{upblock_forward.1} parent=5 // pred_fallthru
        _
      %p554 = scmp.le.s32.totalorder 2, %s9
      // Predicated region
      $region71: #{upblock_forward.1} parent=5 // pred_check
        %p555 = pneg %p554
      $region72: #{upblock_forward.1} parent=5 // pred_check_branch
        %557 = sbr.rel (%p555) target = $region74
      $region73: #{upblock_forward.1} parent=5 // pred_region
        %s558 = ssub.s32 %s9, 2
        // Predicated region
        $region75: #{upblock_forward.1} parent=73 // pred_check
          %p559 = pneg %p133
        $region76: #{upblock_forward.1} parent=73 // pred_check_branch
          %561 = sbr.rel (%p559) target = $region78
        $region77: #{upblock_forward.1} parent=73 // pred_region
          %s562 = sand.u32 %s118, 1
          %s563 = sand.u32 %s118, 1
          %s564 = smul.addr %s563, 128
          %s565 = scalar_lea.vmem [#allocation2], %s564
        $region78: #{upblock_forward.1} parent=73 // pred_fallthru
          _
      $region74: #{upblock_forward.1} parent=5 // pred_fallthru
        _
    $region6: #{upblock_forward.1} parent=1 // loop_footer
      %s13 = sadd.s32 1, %s9
    $region7: #{upblock_forward.1} parent=1 // loop_footer_branch
      %8 = sbr.rel target = $region3
    $region8: #{upblock_forward.1} parent=1 // loop_exit
      _

</llo_original>
